<compile_context>
chip_gen: v5e
topology: v5e:2x2
jax: 0.10.0
libtpu: 0.0.40
codegen_flags: <defaults>
</compile_context>

<pallas_src>
import functools

import jax
import jax.numpy as jnp
from jax import lax
from jax.experimental import pallas as pl
from jax.experimental.pallas import tpu as pltpu


def _focal_loss_kernel(x_ref, tgt_ref, out_ref, acc_ref, *, alpha, gamma, n_total):
    i = pl.program_id(0)

    @pl.when(i == 0)
    def _init():
        acc_ref[...] = jnp.zeros_like(acc_ref)

    x = x_ref[...].astype(jnp.float32)            # (TN, C), cast from native dtype
    tgt = tgt_ref[...]                            # (TN, 1) int32 class indices
    tn, c = x.shape

    # One-hot mask of the target class via a (1, C) lane iota broadcast against
    # the (TN, 1) targets (no full (TN, C) int32 temporary).
    lane = lax.broadcasted_iota(jnp.int32, (1, c), 1)
    onehot = lane == tgt                          # (TN, C) bool

    # Shifted logits; exp(x - m) is reused for both the lse denominator and pt.
    m = jnp.max(x, axis=-1, keepdims=True)        # (TN, 1)
    x_s = x - m
    e = jnp.exp(x_s)                              # (TN, C)
    sum_e = jnp.sum(e, axis=-1, keepdims=True)    # (TN, 1)
    x_t = jnp.sum(jnp.where(onehot, x_s, 0.0), axis=-1, keepdims=True)
    e_t = jnp.sum(jnp.where(onehot, e, 0.0), axis=-1, keepdims=True)

    ce = jnp.log(sum_e) - x_t                     # per-row cross entropy, (TN, 1)

    # pt = softmax prob of the target class, without a second exp: EUP approx
    # reciprocal (rides the otherwise idle EUP slot) + one Newton step for ~f32
    # accuracy (2 cheap VPU mults on a (TN, 1) vector).
    inv = pl.reciprocal(sum_e, approx=True)
    inv = inv * (2.0 - sum_e * inv)
    pt = e_t * inv

    one_minus_pt = 1.0 - pt
    g = float(gamma)
    if g == 2.0:
        focal = one_minus_pt * one_minus_pt       # avoid generic pow (exp+log)
    elif g == 1.0:
        focal = one_minus_pt
    elif g == 0.0:
        focal = jnp.ones_like(one_minus_pt)
    else:
        # Clamp so a pt that rounds marginally above 1 cannot NaN the pow.
        focal = jnp.maximum(one_minus_pt, 0.0) ** jnp.float32(g)

    loss = jnp.float32(alpha) * focal * ce        # (TN, 1)

    # Mask rows past the true batch size (ragged last tile reads padded garbage).
    row = i * tn + lax.broadcasted_iota(jnp.int32, (tn, 1), 0)
    loss = jnp.where(row < n_total, loss, 0.0)

    acc_ref[...] += jnp.sum(loss)                 # running sum in (1,1) VMEM scratch

    @pl.when(i == pl.num_programs(0) - 1)
    def _finalize():
        out_ref[...] = acc_ref[...] * jnp.float32(1.0 / n_total)


def _choose_tile_rows(n, c, itemsize):
    # ~4 MiB per logits buffer; Pallas double-buffers it, and in-kernel f32
    # temporaries add a few more copies -> comfortably inside the 32 MiB scoped
    # VMEM limit we request (valid on v5e / v6e / v7x).
    budget = 4 * 1024 * 1024
    rows = budget // max(1, c * itemsize)
    return min(1024, max(8, (rows // 8) * 8))


def focal_loss(inputs, targets, alpha=0.75, gamma=2.0, tile_rows=None):
    """inputs: (N, C) float logits (any float dtype); targets: (N,) int class indices."""
    n, c = inputs.shape
    tgt2d = targets.astype(jnp.int32).reshape(n, 1)

    if tile_rows is None:
        tile_rows = _choose_tile_rows(n, c, inputs.dtype.itemsize)
    if tile_rows >= n:
        tn = n                                   # single tile: block == full dim is legal
    else:
        tn = max(8, (tile_rows // 8) * 8)        # sublane granularity

    grid = (pl.cdiv(n, tn),)

    kernel = functools.partial(
        _focal_loss_kernel, alpha=float(alpha), gamma=float(gamma), n_total=n
    )

    out = pl.pallas_call(
        kernel,
        out_shape=jax.ShapeDtypeStruct((1, 1), jnp.float32),
        grid=grid,
        in_specs=[
            pl.BlockSpec((tn, c), lambda i: (i, 0)),   # logits tile (native dtype)
            pl.BlockSpec((tn, 1), lambda i: (i, 0)),   # target indices tile
        ],
        out_specs=pl.BlockSpec((1, 1), lambda i: (0, 0)),   # resident scalar output
        scratch_shapes=[pltpu.VMEM((1, 1), jnp.float32)],   # running loss sum
        compiler_params=pltpu.CompilerParams(
            dimension_semantics=("arbitrary",),   # sequential accumulation over tiles
            vmem_limit_bytes=32 * 1024 * 1024,
        ),
    )(inputs, tgt2d)
    return out[0, 0]


def focal_loss_ref(inputs, targets, alpha=0.75, gamma=2.0):
    """Pure-JAX reference matching torch semantics."""
    logp = jax.nn.log_softmax(inputs.astype(jnp.float32), axis=-1)
    ce = -jnp.take_along_axis(logp, targets[:, None].astype(jnp.int32), axis=-1)[:, 0]
    pt = jnp.exp(-ce)
    return jnp.mean(alpha * (1.0 - pt) ** gamma * ce)


if __name__ == "__main__":
    key = jax.random.PRNGKey(0)
    k1, k2 = jax.random.split(key)

    # N deliberately NOT a multiple of the tile so the ragged last-tile masking
    # path (and the multi-tile accumulation) is exercised.
    N, C = 20, 32
    inputs = jax.random.normal(k1, (N, C), dtype=jnp.float32)
    targets = jax.random.randint(k2, (N,), 0, C, dtype=jnp.int32)

    out = focal_loss(inputs, targets, alpha=0.75, gamma=2.0, tile_rows=8)
    out = jax.block_until_ready(out)

    ref = focal_loss_ref(inputs, targets, alpha=0.75, gamma=2.0)
    assert jnp.allclose(out, ref, rtol=1e-4, atol=1e-6), (out, ref)

    print("KERNEL_OK")
</pallas_src>

<mosaic_0001>
module attributes {stable_mosaic.version = 11 : i64} {
  func.func @_focal_loss_kernel(%arg0: i32, %arg1: memref<8x32xf32, #tpu.memory_space<vmem>>, %arg2: memref<8x1xi32, #tpu.memory_space<vmem>>, %arg3: memref<1x1xf32, #tpu.memory_space<vmem>>, %arg4: memref<1x1xf32, #tpu.memory_space<vmem>>) attributes {dimension_semantics = [#tpu.dimension_semantics<arbitrary>], iteration_bounds = array<i64: 3>, scalar_prefetch = 0 : i64, scratch_operands = 1 : i64, tpu.core_type = #tpu.core_type<tc>, window_params = [{transform_indices = @transform_0, window_bounds = array<i64: 8, 32>}, {transform_indices = @transform_1, window_bounds = array<i64: 8, 1>}, {pipeline_mode = #tpu.pipeline_mode<synchronous>, transform_indices = @transform_2, window_bounds = array<i64: 1, 1>}]} {
    %c0_i32 = arith.constant 0 : i32
    %0 = arith.cmpi eq, %arg0, %c0_i32 : i32
    %1 = arith.extui %0 : i1 to i32
    %c0_i32_0 = arith.constant 0 : i32
    %2 = arith.cmpi ne, %1, %c0_i32_0 : i32
    scf.if %2 {
      %cst_19 = arith.constant 0.000000e+00 : f32
      %57 = vector.broadcast %cst_19 : f32 to vector<1x1xf32>
      %c0_20 = arith.constant 0 : index
      %c0_21 = arith.constant 0 : index
      %58 = vector.load %arg4[%c0_20, %c0_21] : memref<1x1xf32, #tpu.memory_space<vmem>>, vector<1x1xf32>
      tpu.vector_store %arg4[%c0_20, %c0_21], %57 {strides = array<i32>} : memref<1x1xf32, #tpu.memory_space<vmem>>, vector<1x1xf32>,
    } else {
    }
    %c0 = arith.constant 0 : index
    %c0_1 = arith.constant 0 : index
    %3 = vector.load %arg1[%c0, %c0_1] : memref<8x32xf32, #tpu.memory_space<vmem>>, vector<8x32xf32>
    %c0_2 = arith.constant 0 : index
    %c0_3 = arith.constant 0 : index
    %4 = vector.load %arg2[%c0_2, %c0_3] : memref<8x1xi32, #tpu.memory_space<vmem>>, vector<8x1xi32>
    %5 = tpu.iota {dimensions = array<i32: 1>} : vector<1x32xi32>
    %6 = vector.broadcast %5 : vector<1x32xi32> to vector<8x32xi32>
    %7 = vector.broadcast %4 : vector<8x1xi32> to vector<8x32xi32>
    %8 = arith.cmpi eq, %6, %7 : vector<8x32xi32>
    %cst = arith.constant dense<0xFF800000> : vector<8xf32>
    %9 = vector.multi_reduction <maximumf>, %3, %cst [1] : vector<8x32xf32> to vector<8xf32>
    %10 = vector.shape_cast %9 : vector<8xf32> to vector<8x1xf32>
    %11 = vector.broadcast %10 : vector<8x1xf32> to vector<8x32xf32>
    %12 = arith.subf %3, %11 : vector<8x32xf32>
    %13 = math.exp %12 : vector<8x32xf32>
    %cst_4 = arith.constant dense<0.000000e+00> : vector<8xf32>
    %14 = vector.multi_reduction <add>, %13, %cst_4 [1] : vector<8x32xf32> to vector<8xf32>
    %15 = vector.shape_cast %14 : vector<8xf32> to vector<8x1xf32>
    %cst_5 = arith.constant 0.000000e+00 : f32
    %16 = vector.broadcast %cst_5 : f32 to vector<8x32xf32>
    %17 = arith.select %8, %12, %16 : vector<8x32xi1>, vector<8x32xf32>
    %cst_6 = arith.constant dense<0.000000e+00> : vector<8xf32>
    %18 = vector.multi_reduction <add>, %17, %cst_6 [1] : vector<8x32xf32> to vector<8xf32>
    %19 = vector.shape_cast %18 : vector<8xf32> to vector<8x1xf32>
    %cst_7 = arith.constant 0.000000e+00 : f32
    %20 = vector.broadcast %cst_7 : f32 to vector<8x32xf32>
    %21 = arith.select %8, %13, %20 : vector<8x32xi1>, vector<8x32xf32>
    %cst_8 = arith.constant dense<0.000000e+00> : vector<8xf32>
    %22 = vector.multi_reduction <add>, %21, %cst_8 [1] : vector<8x32xf32> to vector<8xf32>
    %23 = vector.shape_cast %22 : vector<8xf32> to vector<8x1xf32>
    %24 = math.log %15 : vector<8x1xf32>
    %25 = arith.subf %24, %19 : vector<8x1xf32>
    %26 = tpu.reciprocal %15 {approx = true} : vector<8x1xf32> -> vector<8x1xf32>
    %27 = arith.mulf %15, %26 : vector<8x1xf32>
    %cst_9 = arith.constant 2.000000e+00 : f32
    %28 = vector.broadcast %cst_9 : f32 to vector<8x1xf32>
    %29 = arith.subf %28, %27 : vector<8x1xf32>
    %30 = arith.mulf %26, %29 : vector<8x1xf32>
    %31 = arith.mulf %23, %30 : vector<8x1xf32>
    %cst_10 = arith.constant 1.000000e+00 : f32
    %32 = vector.broadcast %cst_10 : f32 to vector<8x1xf32>
    %33 = arith.subf %32, %31 : vector<8x1xf32>
    %34 = arith.mulf %33, %33 : vector<8x1xf32>
    %cst_11 = arith.constant 7.500000e-01 : f32
    %35 = vector.broadcast %cst_11 : f32 to vector<8x1xf32>
    %36 = arith.mulf %35, %34 : vector<8x1xf32>
    %37 = arith.mulf %36, %25 : vector<8x1xf32>
    %c8_i32 = arith.constant 8 : i32
    %38 = arith.muli %arg0, %c8_i32 : i32
    %39 = tpu.iota {dimensions = array<i32: 0>} : vector<8x1xi32>
    %40 = vector.broadcast %38 : i32 to vector<8x1xi32>
    %41 = arith.addi %40, %39 : vector<8x1xi32>
    %c20_i32 = arith.constant 20 : i32
    %42 = vector.broadcast %c20_i32 : i32 to vector<8x1xi32>
    %43 = arith.cmpi slt, %41, %42 : vector<8x1xi32>
    %cst_12 = arith.constant 0.000000e+00 : f32
    %44 = vector.broadcast %cst_12 : f32 to vector<8x1xf32>
    %45 = arith.select %43, %37, %44 : vector<8x1xi1>, vector<8x1xf32>
    %c0_13 = arith.constant 0 : index
    %c0_14 = arith.constant 0 : index
    %46 = vector.load %arg4[%c0_13, %c0_14] : memref<1x1xf32, #tpu.memory_space<vmem>>, vector<1x1xf32>
    %47 = vector.shape_cast %45 : vector<8x1xf32> to vector<1x8x1xf32>
    %cst_15 = arith.constant dense<0.000000e+00> : vector<1xf32>
    %48 = vector.multi_reduction <add>, %47, %cst_15 [1, 2] : vector<1x8x1xf32> to vector<1xf32>
    %49 = vector.shape_cast %48 : vector<1xf32> to vector<1x1x1xf32>
    %50 = vector.extract %49[0, 0, 0] : f32 from vector<1x1x1xf32>
    %51 = vector.broadcast %50 : f32 to vector<1x1xf32>
    %52 = arith.addf %46, %51 : vector<1x1xf32>
    %c0_16 = arith.constant 0 : index
    %c0_17 = arith.constant 0 : index
    %53 = vector.load %arg4[%c0_16, %c0_17] : memref<1x1xf32, #tpu.memory_space<vmem>>, vector<1x1xf32>
    tpu.vector_store %arg4[%c0_16, %c0_17], %52 {strides = array<i32>} : memref<1x1xf32, #tpu.memory_space<vmem>>, vector<1x1xf32>,
    %c2_i32 = arith.constant 2 : i32
    %54 = arith.cmpi eq, %arg0, %c2_i32 : i32
    %55 = arith.extui %54 : i1 to i32
    %c0_i32_18 = arith.constant 0 : i32
    %56 = arith.cmpi ne, %55, %c0_i32_18 : i32
    scf.if %56 {
      %c0_19 = arith.constant 0 : index
      %c0_20 = arith.constant 0 : index
      %57 = vector.load %arg4[%c0_19, %c0_20] : memref<1x1xf32, #tpu.memory_space<vmem>>, vector<1x1xf32>
      %cst_21 = arith.constant 5.000000e-02 : f32
      %58 = vector.broadcast %cst_21 : f32 to vector<1x1xf32>
      %59 = arith.mulf %57, %58 : vector<1x1xf32>
      %c0_22 = arith.constant 0 : index
      %c0_23 = arith.constant 0 : index
      %60 = vector.load %arg3[%c0_22, %c0_23] : memref<1x1xf32, #tpu.memory_space<vmem>>, vector<1x1xf32>
      tpu.vector_store %arg3[%c0_22, %c0_23], %59 {strides = array<i32>} : memref<1x1xf32, #tpu.memory_space<vmem>>, vector<1x1xf32>,
    } else {
    }
    return
  }
  func.func @transform_0(%arg0: i32) -> (i32, i32) {
    %c0_i32 = arith.constant 0 : i32
    %c0_i32_0 = arith.constant 0 : i32
    return %arg0, %c0_i32 : i32, i32
  }
  func.func @transform_1(%arg0: i32) -> (i32, i32) {
    %c0_i32 = arith.constant 0 : i32
    %c0_i32_0 = arith.constant 0 : i32
    return %arg0, %c0_i32 : i32, i32
  }
  func.func @transform_2(%arg0: i32) -> (i32, i32) {
    %c0_i32 = arith.constant 0 : i32
    %c0_i32_0 = arith.constant 0 : i32
    %c0_i32_1 = arith.constant 0 : i32
    return %c0_i32, %c0_i32_0 : i32, i32
  }
}

</mosaic_0001>

<llo_original>
// kernel: tpu_custom_call.1
$region0: #{tpu_custom_call.1}
  #allocation0 [shape = 'u32[]', space=smem, size = 0x4, offset = 0x4, fixed_abs, tag = 'smem constant byte address 0x4 - core index']
  #allocation1 [shape = 'u32[72,128]{1,0:T(1,128)}', space=vmem, size = 0x9000, scoped, tag = 'internal scratch']
  #allocation2 [shape = 'f32[1,1]{1,0:T(1,128)}', space=vmem, size = 0x200, scoped, tag = 'scratch operand']
  %s0 = inlined_call_operand.vmem [shape: f32[20,32], index: 0, kind: input, shape index: {}]
  %s1 = inlined_call_operand.vmem [shape: s32[20,1], index: 1, kind: input, shape index: {}]
  %s2 = inlined_call_operand.hbm [shape: f32[1,1], index: 2, kind: output, shape index: {}]
  %s3 = sld [smem:[#allocation0]]
  $region49: #{tpu_custom_call.1} parent=0
    _
  %s5 = ssub.s32 1, %s3
  %s6 = scalar_select 0, %s5, %s3
  $region1: #{tpu_custom_call.1} parent=0
    #allocation3 [shape = 'u8[512]{0}', space=vmem, size = 0x400, scoped, tag = 'output window, operand 0, single buffered']
    #allocation4 [shape = 's32[2]{0}', space=sflag, size = 0x8, scoped, tag = 'scoped memory for tpu_custom_call.1']
    %7 = vsyncpa [#allocation4], 0
    loop: start=0, step=1, limit=5
    $region2: #{tpu_custom_call.1} parent=1 // loop_pre_header
      _
    $region3: #{tpu_custom_call.1} parent=1 // loop_header
      %s9 = sphi 0, %s13
      %p10 = scmp.ge.s32.totalorder %s9, 5
      %s19 = sphi 0, %s21
      %s22 = sphi 0, %s19
      %s23 = sphi 0, %s22
      %s39 = sphi 0, %s23
      %s45 = sphi 0, %s47
      %s48 = sphi 0, %s45
      %s49 = sphi 0, %s48
      %s65 = sphi 0, %s49
      %s69 = sphi 0, %s69
      %s71 = sphi 0, %s69
      %s72 = sphi 0, %s71
      %s86 = sphi 0, %s72
    $region4: #{tpu_custom_call.1} parent=1 // loop_header_branch
      %12 = sbr.rel (%p10) target = $region8
    $region5: #{tpu_custom_call.1} parent=1 // loop_body
      %s14 = ssub.s32 %s9, 1
      %s15 = ssub.s32 %s9, 2
      %s16 = sadd.s32 %s9, 1
      %s17 = ssub.s32 %s9, %s16
      %p18 = scmp.eq.s32.totalorder %s17, 0
      %s20 = sadd.s32 %s19, 1
      %s21 = scalar_select %p18, %s19, %s20
      %p24 = pneg %p18
      %p25 = scmp.eq.s32.totalorder %s9, 2
      %p26 = por %p24, %p25
      %p27 = scmp.ne.s32.totalorder %s19, %s22
      %p28 = scmp.eq.s32.totalorder %s9, 0
      %p29 = por %p27, %p28
      %p30 = scmp.ne.s32.totalorder %s19, %s22
      %p31 = scmp.eq.s32.totalorder %s14, 2
      %p32 = por %p30, %p31
      %p33 = scmp.ne.s32.totalorder %s22, %s23
      %p34 = scmp.eq.s32.totalorder %s14, 0
      %p35 = por %p33, %p34
      %p36 = scmp.ne.s32.totalorder %s22, %s23
      %p37 = scmp.eq.s32.totalorder %s15, 2
      %p38 = por %p36, %p37
      %p40 = scmp.ne.s32.totalorder %s23, %s39
      %p41 = scmp.eq.s32.totalorder %s15, 0
      %p42 = por %p40, %p41
      %s43 = ssub.s32 %s9, %s16
      %p44 = scmp.eq.s32.totalorder %s43, 0
      %s46 = sadd.s32 %s45, 1
      %s47 = scalar_select %p44, %s45, %s46
      %p50 = pneg %p44
      %p51 = scmp.eq.s32.totalorder %s9, 2
      %p52 = por %p50, %p51
      %p53 = scmp.ne.s32.totalorder %s45, %s48
      %p54 = scmp.eq.s32.totalorder %s9, 0
      %p55 = por %p53, %p54
      %p56 = scmp.ne.s32.totalorder %s45, %s48
      %p57 = scmp.eq.s32.totalorder %s14, 2
      %p58 = por %p56, %p57
      %p59 = scmp.ne.s32.totalorder %s48, %s49
      %p60 = scmp.eq.s32.totalorder %s14, 0
      %p61 = por %p59, %p60
      %p62 = scmp.ne.s32.totalorder %s48, %s49
      %p63 = scmp.eq.s32.totalorder %s15, 2
      %p64 = por %p62, %p63
      %p66 = scmp.ne.s32.totalorder %s49, %s65
      %p67 = scmp.eq.s32.totalorder %s15, 0
      %p68 = por %p66, %p67
      %s70 = sadd.s32 %s69, 1
      %p73 = scmp.eq.s32.totalorder %s9, 2
      %p74 = scmp.ne.s32.totalorder %s69, %s71
      %p75 = scmp.eq.s32.totalorder %s9, 0
      %p76 = por %p74, %p75
      %p77 = scmp.ne.s32.totalorder %s69, %s71
      %p78 = scmp.eq.s32.totalorder %s14, 2
      %p79 = por %p77, %p78
      %p80 = scmp.ne.s32.totalorder %s71, %s72
      %p81 = scmp.eq.s32.totalorder %s14, 0
      %p82 = por %p80, %p81
      %p83 = scmp.ne.s32.totalorder %s71, %s72
      %p84 = scmp.eq.s32.totalorder %s15, 2
      %p85 = por %p83, %p84
      %p87 = scmp.ne.s32.totalorder %s72, %s86
      %p88 = scmp.eq.s32.totalorder %s15, 0
      %p89 = por %p87, %p88
      %p90 = scmp.le.s32.totalorder 1, %s9
      %p91 = scmp.lt.s32.totalorder %s9, 4
      %p92 = pnand %p90, %p91
      %p93 = pneg %p92
      // Predicated region
      $region9: #{tpu_custom_call.1} parent=5 // pred_check
        _
      $region10: #{tpu_custom_call.1} parent=5 // pred_check_branch
        %95 = sbr.rel (%p92) target = $region12
      $region11: #{tpu_custom_call.1} parent=5 // pred_region
        %s96 = ssub.s32 %s9, 1
      $region12: #{tpu_custom_call.1} parent=5 // pred_fallthru
        _
      %p97 = scmp.lt.s32.totalorder %s9, 3
      // Predicated region
      $region13: #{tpu_custom_call.1} parent=5 // pred_check
        %p98 = pneg %p97
      $region14: #{tpu_custom_call.1} parent=5 // pred_check_branch
        %100 = sbr.rel (%p98) target = $region16
      $region15: #{tpu_custom_call.1} parent=5 // pred_region
        // Predicated region
        $region17: #{tpu_custom_call.1} parent=15 // pred_check
          %p101 = pneg %p29
        $region18: #{tpu_custom_call.1} parent=15 // pred_check_branch
          %103 = sbr.rel (%p101) target = $region20
        $region19: #{tpu_custom_call.1} parent=15 // pred_region
          %p104 = scmp.lt.s32.totalorder %s9, 2
          %s105 = scalar_select %p104, %s9, 2
          %s106 = smul.addr %s105, 8
          %s107 = scalar_lea.vmem %s0, %s106
        $region20: #{tpu_custom_call.1} parent=15 // pred_fallthru
          _
        // Predicated region
        $region21: #{tpu_custom_call.1} parent=15 // pred_check
          %p108 = pneg %p55
        $region22: #{tpu_custom_call.1} parent=15 // pred_check_branch
          %110 = sbr.rel (%p108) target = $region24
        $region23: #{tpu_custom_call.1} parent=15 // pred_region
          %p111 = scmp.lt.s32.totalorder %s9, 2
          %s112 = scalar_select %p111, %s9, 2
          %s113 = smul.addr %s112, 8
          %s114 = scalar_lea.vmem %s1, %s113
        $region24: #{tpu_custom_call.1} parent=15 // pred_fallthru
          _
      $region16: #{tpu_custom_call.1} parent=5 // pred_fallthru
        _
      %p115 = scmp.le.s32.totalorder 1, %s9
      %p116 = scmp.lt.s32.totalorder %s9, 4
      %p117 = pnand %p115, %p116
      %p118 = pneg %p117
      // Predicated region
      $region25: #{tpu_custom_call.1} parent=5 // pred_check
        _
      $region26: #{tpu_custom_call.1} parent=5 // pred_check_branch
        %120 = sbr.rel (%p117) target = $region28
      $region27: #{tpu_custom_call.1} parent=5 // pred_region
        %s121 = ssub.s32 %s9, 1
        %p122 = scmp.lt.s32.totalorder %s14, 2
        %s123 = scalar_select %p122, %s14, 2
        %s124 = smul.addr %s123, 8
        %s125 = scalar_lea.vmem %s0, %s124
        %p126 = pneg %p35
        %p127 = pneg %p32
        %p128 = scmp.lt.s32.totalorder %s14, 2
        %s129 = scalar_select %p128, %s14, 2
        %s130 = smul.addr %s129, 8
        %s131 = scalar_lea.vmem %s1, %s130
        %p132 = pneg %p61
        %p133 = pneg %p58
        %p134 = pneg %p82
        %p135 = pneg %p79
        %p136 = scmp.lt.s32.totalorder %s14, 2
        %s137 = scalar_select %p136, %s14, 2
        %s138 = smul.addr %s137, 8
        %s139 = scalar_lea.vmem %s0, %s138
        %p140 = scmp.lt.s32.totalorder %s14, 2
        %s141 = scalar_select %p140, %s14, 2
        %s142 = smul.addr %s141, 8
        %s143 = scalar_lea.vmem %s1, %s142
        %p144 = scmp.eq.s32.totalorder %s14, 0
        // Predicated region
        $region29: #{tpu_custom_call.1} parent=27 // pred_check
          %p145 = pneg %p144
        $region30: #{tpu_custom_call.1} parent=27 // pred_check_branch
          %147 = sbr.rel (%p145) target = $region32
        $region31: #{tpu_custom_call.1} parent=27 // pred_region
          %vm148 = vcmask 0
          %149 = vst.msk [vmem:[#allocation2] sm:$0x1] %vm148, 0.0
        $region32: #{tpu_custom_call.1} parent=27 // pred_fallthru
          _
        %v150 = vld [vmem:[%s139] sm:$0xff]
        %v151 = vld [vmem:[%s143] sm:$0xff]
        %v152 = vlaneseq
        %v153 = vand.u32 %v152, 127
        %154 = vset.pattern.permute.xlu0 0
        %155 = vperm.xlu0 %154, %v151
        %v156 = vpop.permute.xlu0 %155
        %vm157 = vcmp.eq.s32.totalorder %v153, %v156
        %vm158 = vcmask 261120
        %v159 = vsel %vm158, %v150, -inf
        %160 = vmax.xlane.f32.xlu0 %v159
        %v161 = vpop.xlane.xlu0 %160
        %v162 = vsub.f32 %v150, %v161
        %v163 = vmul.f32 %v162, 1.442695
        %v164 = vpow.pop %v163
        %v165 = vsel %vm158, %v164, 0.0
        %166 = vadd.xlane.f32.xlu0 %v165
        %v167 = vpop.xlane.xlu0 %166
        %v168 = vsel %vm157, %v162, 0.0
        %v169 = vsel %vm158, %v168, 0.0
        %170 = vadd.xlane.f32.xlu0 %v169
        %v171 = vpop.xlane.xlu0 %170
        %v172 = vsel %vm157, %v164, 0.0
        %v173 = vsel %vm158, %v172, 0.0
        %174 = vadd.xlane.f32.xlu0 %v173
        %v175 = vpop.xlane.xlu0 %174
        %v176 = vlog2.pop %v167
        %v177 = vmul.f32 %v176, 0.6931472
        %v178 = vsub.f32 %v177, %v171
        %v179 = vrcp.pop %v167
        %v180 = vmul.f32 %v167, %v179
        %v181 = vsub.f32 2.0, %v180
        %v182 = vmul.f32 %v179, %v181
        %v183 = vmul.f32 %v175, %v182
        %v184 = vsub.f32 1.0, %v183
        %v185 = vmul.f32 %v184, %v184
        %v186 = vmul.f32 %v185, 0.75
        %v187 = vmul.f32 %v186, %v178
        %s188 = smul.u32 %s14, 8
        %v189 = vlaneseq
        %v190 = vshrl.u32 %v189, 7
        %v191 = vstv %s188
        %v192 = vadd.s32 %v191, %v190
        %vm193 = vcmp.lt.s32.totalorder %v192, 20
        %v194 = vsel %vm193, %v187, 0.0
        %v195 = vld [vmem:[#allocation2] sm:$0x1]
        %vm196 = vcmask 7168
        %v197 = vsel %vm196, %v194, 0.0
        %198 = vadd.xlane.f32.xlu0 %v197
        %v199 = vpop.xlane.xlu0 %198
        %v200 = vrot.slane %v199, 4
        %v201 = vadd.f32 %v199, %v200
        %v202 = vrot.slane %v201, 2
        %v203 = vadd.f32 %v201, %v202
        %v204 = vrot.slane %v203, 1
        %v205 = vadd.f32 %v203, %v204
        %s206 = vtos %v205
        %v207 = vstv %s206
        %v208 = vadd.f32 %v195, %v207
        %vm209 = vcmask 0
        %210 = vst.msk [vmem:[#allocation2] sm:$0x1] %vm209, %v208
        %p211 = scmp.eq.s32.totalorder %s14, 2
        // Predicated region
        $region33: #{tpu_custom_call.1} parent=27 // pred_check
          %p212 = pneg %p211
        $region34: #{tpu_custom_call.1} parent=27 // pred_check_branch
          %214 = sbr.rel (%p212) target = $region36
        $region35: #{tpu_custom_call.1} parent=27 // pred_region
          %v215 = vld [vmem:[#allocation2] sm:$0x1]
          %v216 = vmul.f32 %v215, 0.05
          %217 = vst.msk [vmem:[#allocation3] sm:$0x1] %vm209, %v216
        $region36: #{tpu_custom_call.1} parent=27 // pred_fallthru
          _
        // Predicated region
        $region37: #{tpu_custom_call.1} parent=27 // pred_check
          %p218 = pneg %p79
        $region38: #{tpu_custom_call.1} parent=27 // pred_check_branch
          %220 = sbr.rel (%p218) target = $region40
        $region39: #{tpu_custom_call.1} parent=27 // pred_region
          %222 = vsyncadd [#allocation4], 0
          %s224 = sshll.u32 [#allocation3], 4
          %s225 = int_to_ptr.vmem [resolvable:$true] %s224
          %s226 = sshll.u32 %s2, 4
          %s227 = int_to_ptr.hbm [resolvable:$true] %s226
          %229 = dma.vmem_to_hbm [thread:$0]  %s225, 16, %s227, [#allocation4]
        $region40: #{tpu_custom_call.1} parent=27 // pred_fallthru
          _
        // Predicated region
        $region41: #{tpu_custom_call.1} parent=27 // pred_check
          %p230 = pneg %p79
        $region42: #{tpu_custom_call.1} parent=27 // pred_check_branch
          %232 = sbr.rel (%p230) target = $region44
        $region43: #{tpu_custom_call.1} parent=27 // pred_region
          %234 = dma.done [#allocation4], 16
        $region44: #{tpu_custom_call.1} parent=27 // pred_fallthru
          _
      $region28: #{tpu_custom_call.1} parent=5 // pred_fallthru
        _
      %p235 = scmp.le.s32.totalorder 2, %s9
      // Predicated region
      $region45: #{tpu_custom_call.1} parent=5 // pred_check
        %p236 = pneg %p235
      $region46: #{tpu_custom_call.1} parent=5 // pred_check_branch
        %238 = sbr.rel (%p236) target = $region48
      $region47: #{tpu_custom_call.1} parent=5 // pred_region
        %s239 = ssub.s32 %s9, 2
      $region48: #{tpu_custom_call.1} parent=5 // pred_fallthru
        _
    $region6: #{tpu_custom_call.1} parent=1 // loop_footer
      %s13 = sadd.s32 1, %s9
    $region7: #{tpu_custom_call.1} parent=1 // loop_footer_branch
      %8 = sbr.rel target = $region3
    $region8: #{tpu_custom_call.1} parent=1 // loop_exit
      _
    %240 = vsyncpa [#allocation4], 1
    %s241 = scalar_lea.sflag [#allocation4], 1
    %242 = vsyncpa %s241, 1

</llo_original>
